<compile_context>
chip_gen: v5e
topology: v5e:2x2
jax: 0.10.0
libtpu: 0.0.40
codegen_flags: <defaults>
</compile_context>

<pallas_src>
import functools

import jax
import jax.numpy as jnp
from jax import lax
from jax.experimental import pallas as pl
from jax.experimental.pallas import tpu as pltpu

SMOOTH = 1e-5
_LANES = 128
_SUBLANES = 8


def _dice_partials_kernel(x_ref, t_ref, out_ref, *, hw, num_classes, rows):
    """Per-block partial sums for dice.

    x_ref:   (1, C, rows, 128)  logits (any float dtype)
    t_ref:   (1, rows, 128)     int8 labels in {0, 1}
    out_ref: (1, 1, 2*C*8, 128) f32 partials:
             rows [8*c, 8*c+8)        -> intersection partial for channel c
             rows [8*(C+c), +8)       -> cardinality partial for channel c
    """
    j = pl.program_id(1)

    x = x_ref[0].astype(jnp.float32)          # (C, rows, 128)
    t = t_ref[0].astype(jnp.int32)            # (rows, 128)

    # In-kernel tail mask: flattened spatial position of every element in this
    # block; anything >= H*W is padding / out-of-bounds DMA garbage.
    row = lax.broadcasted_iota(jnp.int32, (rows, _LANES), 0)
    lane = lax.broadcasted_iota(jnp.int32, (rows, _LANES), 1)
    pos = (j * rows + row) * _LANES + lane
    valid = pos < hw                          # (rows, 128) bool

    p = jnp.where(valid[None], jax.nn.sigmoid(x), 0.0)           # (C, rows, 128)
    c_iota = lax.broadcasted_iota(jnp.int32, (num_classes, rows, _LANES), 0)
    onehot = jnp.where((t[None] == c_iota) & valid[None], 1.0, 0.0)

    def fold_rows(v):
        # (C, rows, 128) -> (C, 8, 128) via vreg-aligned adds only; the
        # cross-lane/cross-sublane reduce is deferred to the host-side sum.
        acc = v[:, 0:_SUBLANES, :]
        for r in range(_SUBLANES, rows, _SUBLANES):
            acc = acc + v[:, r:r + _SUBLANES, :]
        return acc

    inter = fold_rows(p * onehot)             # (C, 8, 128)
    card = fold_rows(p) + fold_rows(onehot)   # (C, 8, 128)

    for c in range(num_classes):
        out_ref[0, 0, c * _SUBLANES:(c + 1) * _SUBLANES, :] = inter[c]
        base = (num_classes + c) * _SUBLANES
        out_ref[0, 0, base:base + _SUBLANES, :] = card[c]


def dice_loss(inputs, target, *, smooth=SMOOTH, block_rows=256):
    """Pallas implementation of DiceLoss.forward(input, target)."""
    N, C, H, W = inputs.shape
    assert C == 2, "DiceLoss uses torch.eye(2) -> exactly 2 channels"
    HW = H * W

    # Free reshapes (no data movement for contiguous NCHW / N1HW inputs).
    x = inputs.reshape(N, C, HW)
    t = target.reshape(N, HW)
    if t.dtype != jnp.int8:
        t = t.astype(jnp.int8)                # labels are {0, 1}

    # Lane-align the flattened spatial axis.  When HW % 128 == 0 (typical
    # image sizes) this is another free reshape; otherwise pad once.
    R = pl.cdiv(HW, _LANES)
    if R * _LANES != HW:
        pad = R * _LANES - HW
        x = jnp.pad(x, ((0, 0), (0, 0), (0, pad)))
        t = jnp.pad(t, ((0, 0), (0, pad)))
    x = x.reshape(N, C, R, _LANES)
    t = t.reshape(N, R, _LANES)

    # Sublane tile: multiple of 32 (int8 packing), hence also of 8 (f32).
    # Default 256 rows -> 32K elements/channel/block: well past the ~85%-of-
    # roofline tile size, ~0.6 MiB of VMEM including double buffering.
    rb = max(32, min(block_rows, pl.cdiv(R, 32) * 32))
    rb = pl.cdiv(rb, 32) * 32
    num_tiles = pl.cdiv(R, rb)

    kernel = functools.partial(_dice_partials_kernel, hw=HW, num_classes=C,
                               rows=rb)

    partials = pl.pallas_call(
        kernel,
        out_shape=jax.ShapeDtypeStruct(
            (N, num_tiles, 2 * C * _SUBLANES, _LANES), jnp.float32),
        grid_spec=pltpu.PrefetchScalarGridSpec(
            num_scalar_prefetch=0,
            grid=(N, num_tiles),
            in_specs=[
                pl.BlockSpec((1, C, rb, _LANES), lambda n, j: (n, 0, j, 0)),
                pl.BlockSpec((1, rb, _LANES), lambda n, j: (n, j, 0)),
            ],
            out_specs=pl.BlockSpec((1, 1, 2 * C * _SUBLANES, _LANES),
                                   lambda n, j: (n, j, 0, 0)),
        ),
        compiler_params=pltpu.CompilerParams(
            dimension_semantics=("parallel", "parallel")),
    )(x, t)

    # Tiny final reduction + dice arithmetic outside the kernel.
    sums = partials.reshape(N, num_tiles, 2 * C, _SUBLANES, _LANES).sum(
        axis=(0, 1, 3, 4))                     # (2C,) = [I_0, I_1, K_0, K_1]
    inter = sums[:C]
    card = sums[C:]
    dice = jnp.mean(2.0 * inter / (card + smooth))
    return 1.0 - dice


def dice_loss_ref(inputs, target, smooth=SMOOTH):
    """Pure-JAX reference matching the PyTorch forward exactly."""
    onehot = jax.nn.one_hot(target[:, 0], 2, dtype=jnp.float32)   # (N,H,W,2)
    onehot = jnp.transpose(onehot, (0, 3, 1, 2))                  # (N,2,H,W)
    p = jax.nn.sigmoid(inputs.astype(jnp.float32))
    dims = (0, 2, 3)
    inter = jnp.sum(p * onehot, dims)
    card = jnp.sum(p + onehot, dims)
    dice = jnp.mean(2.0 * inter / (card + smooth))
    return 1.0 - dice


if __name__ == "__main__":
    key = jax.random.PRNGKey(0)
    k1, k2, k3, k4 = jax.random.split(key, 4)

    # Small shape matching the module (binary segmentation logits + labels).
    N, C, H, W = 2, 2, 16, 16
    x = jax.random.normal(k1, (N, C, H, W), dtype=jnp.float32)
    t = jax.random.randint(k2, (N, 1, H, W), 0, 2, dtype=jnp.int32).astype(jnp.int8)

    loss = jax.block_until_ready(dice_loss(x, t))
    ref = dice_loss_ref(x, t)
    assert jnp.allclose(loss, ref, atol=1e-5, rtol=1e-5), (loss, ref)

    # Extra check: spatial size not a multiple of 128 and more than one row
    # tile, so the in-kernel tail mask and multi-tile indexing are exercised.
    x2 = jax.random.normal(k3, (1, 2, 72, 72), dtype=jnp.float32)
    t2 = jax.random.randint(k4, (1, 1, 72, 72), 0, 2, dtype=jnp.int32).astype(jnp.int8)
    loss2 = jax.block_until_ready(dice_loss(x2, t2, block_rows=32))
    ref2 = dice_loss_ref(x2, t2)
    assert jnp.allclose(loss2, ref2, atol=1e-5, rtol=1e-5), (loss2, ref2)

    print("KERNEL_OK")
</pallas_src>

<mosaic_0001>
module attributes {stable_mosaic.version = 11 : i64} {
  func.func @_dice_partials_kernel(%arg0: i32, %arg1: i32, %arg2: memref<1x2x32x128xf32, #tpu.memory_space<vmem>>, %arg3: memref<1x32x128xi8, #tpu.memory_space<vmem>>, %arg4: memref<1x1x32x128xf32, #tpu.memory_space<vmem>>) attributes {dimension_semantics = [#tpu.dimension_semantics<parallel>, #tpu.dimension_semantics<parallel>], iteration_bounds = array<i64: 2, 1>, scalar_prefetch = 0 : i64, scratch_operands = 0 : i64, tpu.core_type = #tpu.core_type<tc>, window_params = [{transform_indices = @transform_0, window_bounds = array<i64: 1, 2, 32, 128>}, {transform_indices = @transform_1, window_bounds = array<i64: 1, 32, 128>}, {transform_indices = @transform_2, window_bounds = array<i64: 1, 1, 32, 128>}]} {
    %c0 = arith.constant 0 : index
    %c0_0 = arith.constant 0 : index
    %c0_1 = arith.constant 0 : index
    %c0_2 = arith.constant 0 : index
    %0 = vector.load %arg2[%c0, %c0_0, %c0_1, %c0_2] : memref<1x2x32x128xf32, #tpu.memory_space<vmem>>, vector<1x2x32x128xf32>
    %1 = vector.shape_cast %0 : vector<1x2x32x128xf32> to vector<2x32x128xf32>
    %c0_3 = arith.constant 0 : index
    %c0_4 = arith.constant 0 : index
    %c0_5 = arith.constant 0 : index
    %2 = vector.load %arg3[%c0_3, %c0_4, %c0_5] : memref<1x32x128xi8, #tpu.memory_space<vmem>>, vector<1x32x128xi8>
    %3 = vector.shape_cast %2 : vector<1x32x128xi8> to vector<32x128xi8>
    %4 = arith.extsi %3 : vector<32x128xi8> to vector<32x128xi32>
    %5 = tpu.iota {dimensions = array<i32: 0>} : vector<32x128xi32>
    %6 = tpu.iota {dimensions = array<i32: 1>} : vector<32x128xi32>
    %c32_i32 = arith.constant 32 : i32
    %7 = arith.muli %arg1, %c32_i32 : i32
    %8 = vector.broadcast %7 : i32 to vector<32x128xi32>
    %9 = arith.addi %8, %5 : vector<32x128xi32>
    %c128_i32 = arith.constant 128 : i32
    %10 = vector.broadcast %c128_i32 : i32 to vector<32x128xi32>
    %11 = arith.muli %9, %10 : vector<32x128xi32>
    %12 = arith.addi %11, %6 : vector<32x128xi32>
    %c256_i32 = arith.constant 256 : i32
    %13 = vector.broadcast %c256_i32 : i32 to vector<32x128xi32>
    %14 = arith.cmpi slt, %12, %13 : vector<32x128xi32>
    %15 = vector.shape_cast %14 : vector<32x128xi1> to vector<1x32x128xi1>
    %16 = arith.negf %1 : vector<2x32x128xf32>
    %17 = math.exp %16 : vector<2x32x128xf32>
    %cst = arith.constant 1.000000e+00 : f32
    %18 = vector.broadcast %cst : f32 to vector<2x32x128xf32>
    %19 = arith.addf %18, %17 : vector<2x32x128xf32>
    %20 = arith.divf %18, %19 : vector<2x32x128xf32>
    %cst_6 = arith.constant 0.000000e+00 : f32
    %21 = vector.shape_cast %15 : vector<1x32x128xi1> to vector<1x32x128xi1>
    %22 = vector.broadcast %21 : vector<1x32x128xi1> to vector<2x32x128xi1>
    %23 = vector.broadcast %cst_6 : f32 to vector<2x32x128xf32>
    %24 = arith.select %22, %20, %23 : vector<2x32x128xi1>, vector<2x32x128xf32>
    %25 = tpu.iota {dimensions = array<i32: 0>} : vector<2x32x128xi32>
    %26 = vector.shape_cast %4 : vector<32x128xi32> to vector<1x32x128xi32>
    %27 = vector.broadcast %26 : vector<1x32x128xi32> to vector<2x32x128xi32>
    %28 = arith.cmpi eq, %27, %25 : vector<2x32x128xi32>
    %29 = vector.shape_cast %14 : vector<32x128xi1> to vector<1x32x128xi1>
    %30 = vector.broadcast %29 : vector<1x32x128xi1> to vector<2x32x128xi1>
    %31 = arith.andi %28, %30 : vector<2x32x128xi1>
    %cst_7 = arith.constant 1.000000e+00 : f32
    %cst_8 = arith.constant 0.000000e+00 : f32
    %32 = vector.broadcast %cst_7 : f32 to vector<2x32x128xf32>
    %33 = vector.broadcast %cst_8 : f32 to vector<2x32x128xf32>
    %34 = arith.select %31, %32, %33 : vector<2x32x128xi1>, vector<2x32x128xf32>
    %35 = arith.mulf %24, %34 : vector<2x32x128xf32>
    %36 = vector.extract_strided_slice %35 {offsets = [0, 0, 0], sizes = [2, 8, 128], strides = [1, 1, 1]} : vector<2x32x128xf32> to vector<2x8x128xf32>
    %37 = vector.extract_strided_slice %35 {offsets = [0, 8, 0], sizes = [2, 8, 128], strides = [1, 1, 1]} : vector<2x32x128xf32> to vector<2x8x128xf32>
    %38 = arith.addf %36, %37 : vector<2x8x128xf32>
    %39 = vector.extract_strided_slice %35 {offsets = [0, 16, 0], sizes = [2, 8, 128], strides = [1, 1, 1]} : vector<2x32x128xf32> to vector<2x8x128xf32>
    %40 = arith.addf %38, %39 : vector<2x8x128xf32>
    %41 = vector.extract_strided_slice %35 {offsets = [0, 24, 0], sizes = [2, 8, 128], strides = [1, 1, 1]} : vector<2x32x128xf32> to vector<2x8x128xf32>
    %42 = arith.addf %40, %41 : vector<2x8x128xf32>
    %43 = vector.extract_strided_slice %24 {offsets = [0, 0, 0], sizes = [2, 8, 128], strides = [1, 1, 1]} : vector<2x32x128xf32> to vector<2x8x128xf32>
    %44 = vector.extract_strided_slice %24 {offsets = [0, 8, 0], sizes = [2, 8, 128], strides = [1, 1, 1]} : vector<2x32x128xf32> to vector<2x8x128xf32>
    %45 = arith.addf %43, %44 : vector<2x8x128xf32>
    %46 = vector.extract_strided_slice %24 {offsets = [0, 16, 0], sizes = [2, 8, 128], strides = [1, 1, 1]} : vector<2x32x128xf32> to vector<2x8x128xf32>
    %47 = arith.addf %45, %46 : vector<2x8x128xf32>
    %48 = vector.extract_strided_slice %24 {offsets = [0, 24, 0], sizes = [2, 8, 128], strides = [1, 1, 1]} : vector<2x32x128xf32> to vector<2x8x128xf32>
    %49 = arith.addf %47, %48 : vector<2x8x128xf32>
    %50 = vector.extract_strided_slice %34 {offsets = [0, 0, 0], sizes = [2, 8, 128], strides = [1, 1, 1]} : vector<2x32x128xf32> to vector<2x8x128xf32>
    %51 = vector.extract_strided_slice %34 {offsets = [0, 8, 0], sizes = [2, 8, 128], strides = [1, 1, 1]} : vector<2x32x128xf32> to vector<2x8x128xf32>
    %52 = arith.addf %50, %51 : vector<2x8x128xf32>
    %53 = vector.extract_strided_slice %34 {offsets = [0, 16, 0], sizes = [2, 8, 128], strides = [1, 1, 1]} : vector<2x32x128xf32> to vector<2x8x128xf32>
    %54 = arith.addf %52, %53 : vector<2x8x128xf32>
    %55 = vector.extract_strided_slice %34 {offsets = [0, 24, 0], sizes = [2, 8, 128], strides = [1, 1, 1]} : vector<2x32x128xf32> to vector<2x8x128xf32>
    %56 = arith.addf %54, %55 : vector<2x8x128xf32>
    %57 = arith.addf %49, %56 : vector<2x8x128xf32>
    %58 = vector.extract_strided_slice %42 {offsets = [0, 0, 0], sizes = [1, 8, 128], strides = [1, 1, 1]} : vector<2x8x128xf32> to vector<1x8x128xf32>
    %59 = vector.shape_cast %58 : vector<1x8x128xf32> to vector<8x128xf32>
    %c0_9 = arith.constant 0 : index
    %c0_10 = arith.constant 0 : index
    %c0_11 = arith.constant 0 : index
    %c0_12 = arith.constant 0 : index
    %60 = vector.load %arg4[%c0_9, %c0_10, %c0_11, %c0_12] : memref<1x1x32x128xf32, #tpu.memory_space<vmem>>, vector<1x1x8x128xf32>
    %61 = vector.shape_cast %60 : vector<1x1x8x128xf32> to vector<8x128xf32>
    %62 = vector.shape_cast %59 : vector<8x128xf32> to vector<1x1x8x128xf32>
    tpu.vector_store %arg4[%c0_9, %c0_10, %c0_11, %c0_12], %62 {strides = array<i32>} : memref<1x1x32x128xf32, #tpu.memory_space<vmem>>, vector<1x1x8x128xf32>,
    %63 = vector.extract_strided_slice %57 {offsets = [0, 0, 0], sizes = [1, 8, 128], strides = [1, 1, 1]} : vector<2x8x128xf32> to vector<1x8x128xf32>
    %64 = vector.shape_cast %63 : vector<1x8x128xf32> to vector<8x128xf32>
    %c0_13 = arith.constant 0 : index
    %c0_14 = arith.constant 0 : index
    %c16 = arith.constant 16 : index
    %c0_15 = arith.constant 0 : index
    %65 = vector.load %arg4[%c0_13, %c0_14, %c16, %c0_15] : memref<1x1x32x128xf32, #tpu.memory_space<vmem>>, vector<1x1x8x128xf32>
    %66 = vector.shape_cast %65 : vector<1x1x8x128xf32> to vector<8x128xf32>
    %67 = vector.shape_cast %64 : vector<8x128xf32> to vector<1x1x8x128xf32>
    tpu.vector_store %arg4[%c0_13, %c0_14, %c16, %c0_15], %67 {strides = array<i32>} : memref<1x1x32x128xf32, #tpu.memory_space<vmem>>, vector<1x1x8x128xf32>,
    %68 = vector.extract_strided_slice %42 {offsets = [1, 0, 0], sizes = [1, 8, 128], strides = [1, 1, 1]} : vector<2x8x128xf32> to vector<1x8x128xf32>
    %69 = vector.shape_cast %68 : vector<1x8x128xf32> to vector<8x128xf32>
    %c0_16 = arith.constant 0 : index
    %c0_17 = arith.constant 0 : index
    %c8 = arith.constant 8 : index
    %c0_18 = arith.constant 0 : index
    %70 = vector.load %arg4[%c0_16, %c0_17, %c8, %c0_18] : memref<1x1x32x128xf32, #tpu.memory_space<vmem>>, vector<1x1x8x128xf32>
    %71 = vector.shape_cast %70 : vector<1x1x8x128xf32> to vector<8x128xf32>
    %72 = vector.shape_cast %69 : vector<8x128xf32> to vector<1x1x8x128xf32>
    tpu.vector_store %arg4[%c0_16, %c0_17, %c8, %c0_18], %72 {strides = array<i32>} : memref<1x1x32x128xf32, #tpu.memory_space<vmem>>, vector<1x1x8x128xf32>,
    %73 = vector.extract_strided_slice %57 {offsets = [1, 0, 0], sizes = [1, 8, 128], strides = [1, 1, 1]} : vector<2x8x128xf32> to vector<1x8x128xf32>
    %74 = vector.shape_cast %73 : vector<1x8x128xf32> to vector<8x128xf32>
    %c0_19 = arith.constant 0 : index
    %c0_20 = arith.constant 0 : index
    %c24 = arith.constant 24 : index
    %c0_21 = arith.constant 0 : index
    %75 = vector.load %arg4[%c0_19, %c0_20, %c24, %c0_21] : memref<1x1x32x128xf32, #tpu.memory_space<vmem>>, vector<1x1x8x128xf32>
    %76 = vector.shape_cast %75 : vector<1x1x8x128xf32> to vector<8x128xf32>
    %77 = vector.shape_cast %74 : vector<8x128xf32> to vector<1x1x8x128xf32>
    tpu.vector_store %arg4[%c0_19, %c0_20, %c24, %c0_21], %77 {strides = array<i32>} : memref<1x1x32x128xf32, #tpu.memory_space<vmem>>, vector<1x1x8x128xf32>,
    return
  }
  func.func @transform_0(%arg0: i32, %arg1: i32) -> (i32, i32, i32, i32) {
    %c0_i32 = arith.constant 0 : i32
    %c0_i32_0 = arith.constant 0 : i32
    %c0_i32_1 = arith.constant 0 : i32
    return %arg0, %c0_i32, %arg1, %c0_i32_0 : i32, i32, i32, i32
  }
  func.func @transform_1(%arg0: i32, %arg1: i32) -> (i32, i32, i32) {
    %c0_i32 = arith.constant 0 : i32
    %c0_i32_0 = arith.constant 0 : i32
    return %arg0, %arg1, %c0_i32 : i32, i32, i32
  }
  func.func @transform_2(%arg0: i32, %arg1: i32) -> (i32, i32, i32, i32) {
    %c0_i32 = arith.constant 0 : i32
    %c0_i32_0 = arith.constant 0 : i32
    %c0_i32_1 = arith.constant 0 : i32
    return %arg0, %arg1, %c0_i32, %c0_i32_0 : i32, i32, i32, i32
  }
}

</mosaic_0001>

<llo_original>
// kernel: tpu_custom_call.1
$region0: #{tpu_custom_call.1}
  #allocation0 [shape = 'u32[]', space=smem, size = 0x4, offset = 0x4, fixed_abs, tag = 'smem constant byte address 0x4 - core index']
  #allocation1 [shape = 'u32[72,128]{1,0:T(1,128)}', space=vmem, size = 0x9000, scoped, tag = 'internal scratch']
  #allocation8 [shape = 's32[]', space=sflag, size = 0x4, offset = 0, fixed_abs, tag = 'sflag constant byte address 0x0 - dummy sync flag']
  %s0 = inlined_call_operand.hbm [shape: f32[2,2,2,128], index: 0, kind: input, shape index: {}]
  %s1 = inlined_call_operand.hbm [shape: s8[2,2,128], index: 1, kind: input, shape index: {}]
  %s2 = inlined_call_operand.hbm [shape: f32[2,1,32,128], index: 2, kind: output, shape index: {}]
  %s3 = sld [smem:[#allocation0]]
  $region49: #{tpu_custom_call.1} parent=0
    _
  %s5 = ssub.s32 1, %s3
  %s6 = scalar_select 0, %s5, %s3
  $region1: #{tpu_custom_call.1} parent=0
    #allocation2 [shape = 'u8[65536]{0}', space=vmem, size = 0x10000, scoped, tag = 'input window, operand 0']
    #allocation3 [shape = 's32[2]{0}', space=sflag, size = 0x8, scoped, tag = 'scoped memory for tpu_custom_call.1']
    #allocation4 [shape = 's32[2]{0}', space=sflag, size = 0x8, scoped, tag = 'scoped memory for tpu_custom_call.1']
    #allocation5 [shape = 'u8[8192]{0}', space=vmem, size = 0x2000, scoped, tag = 'input window, operand 1']
    #allocation6 [shape = 's32[2]{0}', space=sflag, size = 0x8, scoped, tag = 'scoped memory for tpu_custom_call.1']
    #allocation7 [shape = 'u8[32768]{0}', space=vmem, size = 0x8000, scoped, tag = 'output window, operand 0']
    %7 = vsyncpa [#allocation3], 0
    %s8 = scalar_lea.sflag [#allocation3], 1
    %9 = vsyncpa %s8, 0
    %10 = vsyncpa [#allocation6], 0
    %s11 = scalar_lea.sflag [#allocation6], 1
    %12 = vsyncpa %s11, 0
    %13 = vsyncpa [#allocation4], 0
    %s14 = scalar_lea.sflag [#allocation4], 1
    %15 = vsyncpa %s14, 0
    loop: start=0, step=1, limit=4
    $region2: #{tpu_custom_call.1} parent=1 // loop_pre_header
      _
    $region3: #{tpu_custom_call.1} parent=1 // loop_header
      %s17 = sphi 0, %s21
      %p18 = scmp.ge.s32.totalorder %s17, 4
      %s24 = sphi 0, %s36
      %s25 = sphi 0, %s32
      %s26 = sphi 0, %s24
      %s27 = sphi 0, %s25
      %s28 = sphi 0, %s26
      %s29 = sphi 0, %s27
      %s41 = sphi 0, %s43
      %s44 = sphi 0, %s41
      %s45 = sphi 0, %s44
      %s61 = sphi 0, %s45
      %s69 = sphi 0, %s71
      %s72 = sphi 0, %s69
      %s73 = sphi 0, %s72
      %s89 = sphi 0, %s73
      %s97 = sphi 0, %s99
      %s100 = sphi 0, %s97
      %s101 = sphi 0, %s100
      %s117 = sphi 0, %s101
    $region4: #{tpu_custom_call.1} parent=1 // loop_header_branch
      %20 = sbr.rel (%p18) target = $region8
    $region5: #{tpu_custom_call.1} parent=1 // loop_body
      %s22 = ssub.s32 %s17, 1
      %s23 = ssub.s32 %s17, 2
      %s30 = sadd.s32 1, %s25
      %p31 = scmp.ge.s32.totalorder %s30, 1
      %s32 = scalar_select %p31, 0, %s30
      %s33 = sadd.s32 1, %s24
      %s34 = scalar_select %p31, %s33, %s24
      %p35 = scmp.ge.s32.totalorder %s34, 2
      %s36 = scalar_select %p35, 0, %s34
      %s37 = ssub.s32 %s24, %s36
      %s38 = ssub.s32 %s25, %s32
      %s39 = sor.u32 %s37, %s38
      %p40 = scmp.eq.s32.totalorder %s39, 0
      %s42 = sadd.s32 %s41, 1
      %s43 = scalar_select %p40, %s41, %s42
      %p46 = pneg %p40
      %p47 = scmp.eq.s32.totalorder %s17, 1
      %p48 = por %p46, %p47
      %p49 = scmp.ne.s32.totalorder %s41, %s44
      %p50 = scmp.eq.s32.totalorder %s17, 0
      %p51 = por %p49, %p50
      %p52 = scmp.ne.s32.totalorder %s41, %s44
      %p53 = scmp.eq.s32.totalorder %s22, 1
      %p54 = por %p52, %p53
      %p55 = scmp.ne.s32.totalorder %s44, %s45
      %p56 = scmp.eq.s32.totalorder %s22, 0
      %p57 = por %p55, %p56
      %p58 = scmp.ne.s32.totalorder %s44, %s45
      %p59 = scmp.eq.s32.totalorder %s23, 1
      %p60 = por %p58, %p59
      %p62 = scmp.ne.s32.totalorder %s45, %s61
      %p63 = scmp.eq.s32.totalorder %s23, 0
      %p64 = por %p62, %p63
      %s65 = ssub.s32 %s24, %s36
      %s66 = ssub.s32 %s25, %s32
      %s67 = sor.u32 %s65, %s66
      %p68 = scmp.eq.s32.totalorder %s67, 0
      %s70 = sadd.s32 %s69, 1
      %s71 = scalar_select %p68, %s69, %s70
      %p74 = pneg %p68
      %p75 = scmp.eq.s32.totalorder %s17, 1
      %p76 = por %p74, %p75
      %p77 = scmp.ne.s32.totalorder %s69, %s72
      %p78 = scmp.eq.s32.totalorder %s17, 0
      %p79 = por %p77, %p78
      %p80 = scmp.ne.s32.totalorder %s69, %s72
      %p81 = scmp.eq.s32.totalorder %s22, 1
      %p82 = por %p80, %p81
      %p83 = scmp.ne.s32.totalorder %s72, %s73
      %p84 = scmp.eq.s32.totalorder %s22, 0
      %p85 = por %p83, %p84
      %p86 = scmp.ne.s32.totalorder %s72, %s73
      %p87 = scmp.eq.s32.totalorder %s23, 1
      %p88 = por %p86, %p87
      %p90 = scmp.ne.s32.totalorder %s73, %s89
      %p91 = scmp.eq.s32.totalorder %s23, 0
      %p92 = por %p90, %p91
      %s93 = ssub.s32 %s24, %s36
      %s94 = ssub.s32 %s25, %s32
      %s95 = sor.u32 %s93, %s94
      %p96 = scmp.eq.s32.totalorder %s95, 0
      %s98 = sadd.s32 %s97, 1
      %s99 = scalar_select %p96, %s97, %s98
      %p102 = pneg %p96
      %p103 = scmp.eq.s32.totalorder %s17, 1
      %p104 = por %p102, %p103
      %p105 = scmp.ne.s32.totalorder %s97, %s100
      %p106 = scmp.eq.s32.totalorder %s17, 0
      %p107 = por %p105, %p106
      %p108 = scmp.ne.s32.totalorder %s97, %s100
      %p109 = scmp.eq.s32.totalorder %s22, 1
      %p110 = por %p108, %p109
      %p111 = scmp.ne.s32.totalorder %s100, %s101
      %p112 = scmp.eq.s32.totalorder %s22, 0
      %p113 = por %p111, %p112
      %p114 = scmp.ne.s32.totalorder %s100, %s101
      %p115 = scmp.eq.s32.totalorder %s23, 1
      %p116 = por %p114, %p115
      %p118 = scmp.ne.s32.totalorder %s101, %s117
      %p119 = scmp.eq.s32.totalorder %s23, 0
      %p120 = por %p118, %p119
      %p121 = scmp.le.s32.totalorder 1, %s17
      %p122 = scmp.lt.s32.totalorder %s17, 3
      %p123 = pnand %p121, %p122
      %p124 = pneg %p123
      // Predicated region
      $region9: #{tpu_custom_call.1} parent=5 // pred_check
        _
      $region10: #{tpu_custom_call.1} parent=5 // pred_check_branch
        %126 = sbr.rel (%p123) target = $region12
      $region11: #{tpu_custom_call.1} parent=5 // pred_region
        %s127 = ssub.s32 %s17, 1
      $region12: #{tpu_custom_call.1} parent=5 // pred_fallthru
        _
      %p128 = scmp.lt.s32.totalorder %s17, 2
      // Predicated region
      $region13: #{tpu_custom_call.1} parent=5 // pred_check
        %p129 = pneg %p128
      $region14: #{tpu_custom_call.1} parent=5 // pred_check_branch
        %131 = sbr.rel (%p129) target = $region16
      $region15: #{tpu_custom_call.1} parent=5 // pred_region
        // Predicated region
        $region17: #{tpu_custom_call.1} parent=15 // pred_check
          %p132 = pneg %p51
        $region18: #{tpu_custom_call.1} parent=15 // pred_check_branch
          %134 = sbr.rel (%p132) target = $region20
        $region19: #{tpu_custom_call.1} parent=15 // pred_region
          #allocation9 [shape = 'u32[6]{0}', space=smem, size = 0x18, scoped, tag = 'DMA stride descriptor']
          %s135 = sand.u32 %s41, 1
          %s136 = scalar_lea.sflag [#allocation3], %s135
          %s137 = sand.u32 %s41, 1
          %s138 = smul.addr %s137, 64
          %s139 = scalar_lea.vmem [#allocation2], %s138
          %s140 = smul.u32 16, %s25
          %s141 = ssub.s32 1, %s140
          %s142 = smul.u32 4, %s141
          %s143 = ssub.s32 64, %s142
          %s144 = sshll.u32 %s143, 4
          %145 = vsyncadd %s136, %s144
          %p146 = scmp.ne.s32.totalorder 0, %s142
          %s147 = smul.addr %s24, 2
          %s148 = sadd.s32 %s140, %s147
          %s149 = smul.addr %s148, 2
          %s150 = scalar_lea.hbm %s0, %s149
          %s151 = smul.u32 2, %s141
          %s152 = smul.u32 %s151, 2
          %s154 = sshll.u32 1, 14
          %s155 = sxor.u32 4294967295, %s154
          %s157 = sld [smem:[#allocation0]]
          %s158 = sadd.s32 2, %s157
          %s160 = sshll.u32 7, 26
          %s161 = sxor.u32 4294967295, %s160
          %s162 = sand.u32 0, %s161
          %s163 = sshll.u32 %s158, 26
          %s164 = sor.u32 %s162, %s163
          %s165 = sshll.u32 %s150, 4
          %s166 = int_to_ptr.hbm [resolvable:$true] %s165
          %s167 = sshll.u32 %s139, 4
          %s168 = int_to_ptr.vmem [resolvable:$true] %s167
          %s169 = sshll.u32 %s152, 4
          %174 = sst [smem:[#allocation9]] 32
          %s175 = scalar_lea.smem [#allocation9], 1
          %176 = sst [smem:[%s175]] 512
          %s177 = scalar_lea.smem [#allocation9], 2
          %178 = sst [smem:[%s177]] %s141
          %s179 = scalar_lea.smem [#allocation9], 3
          %180 = sst [smem:[%s179]] 32
          %s181 = scalar_lea.smem [#allocation9], 4
          %182 = sst [smem:[%s181]] 32
          %s183 = scalar_lea.smem [#allocation9], 5
          %184 = sst [smem:[%s183]] 2
          %186 = dma.general (%p146), %s166, %s169, %s168, %s136, [#allocation8], [#allocation9], %s164, 0
        $region20: #{tpu_custom_call.1} parent=15 // pred_fallthru
          _
        // Predicated region
        $region21: #{tpu_custom_call.1} parent=15 // pred_check
          %p187 = pneg %p79
        $region22: #{tpu_custom_call.1} parent=15 // pred_check_branch
          %189 = sbr.rel (%p187) target = $region24
        $region23: #{tpu_custom_call.1} parent=15 // pred_region
          %s190 = sand.u32 %s69, 1
          %s191 = scalar_lea.sflag [#allocation6], %s190
          %s192 = sand.u32 %s69, 1
          %s193 = smul.addr %s192, 8
          %s194 = scalar_lea.vmem [#allocation5], %s193
          %s195 = smul.u32 8, %s25
          %s196 = ssub.s32 1, %s195
          %s197 = ssub.s32 8, %s196
          %s198 = sshll.u32 %s197, 4
          %199 = vsyncadd %s191, %s198
          %p200 = scmp.ne.s32.totalorder 0, %s196
          %s201 = sadd.s32 %s195, %s24
          %s202 = scalar_lea.hbm %s1, %s201
          %s203 = sshll.u32 %s202, 4
          %s204 = int_to_ptr.hbm [resolvable:$true] %s203
          %s205 = sshll.u32 %s194, 4
          %s206 = int_to_ptr.vmem [resolvable:$true] %s205
          %s207 = sshll.u32 %s196, 4
          %211 = dma.hbm_to_vmem [thread:$0]  (%p200), %s204, %s207, %s206, %s191, 16, 16, 1
        $region24: #{tpu_custom_call.1} parent=15 // pred_fallthru
          _
      $region16: #{tpu_custom_call.1} parent=5 // pred_fallthru
        _
      %p212 = scmp.le.s32.totalorder 1, %s17
      %p213 = scmp.lt.s32.totalorder %s17, 3
      %p214 = pnand %p212, %p213
      %p215 = pneg %p214
      // Predicated region
      $region25: #{tpu_custom_call.1} parent=5 // pred_check
        _
      $region26: #{tpu_custom_call.1} parent=5 // pred_check_branch
        %217 = sbr.rel (%p214) target = $region28
      $region27: #{tpu_custom_call.1} parent=5 // pred_region
        %s218 = ssub.s32 %s17, 1
        %s219 = sand.u32 %s44, 1
        %s220 = scalar_lea.sflag [#allocation3], %s219
        %s221 = sand.u32 %s44, 1
        %s222 = smul.addr %s221, 64
        %s223 = scalar_lea.vmem [#allocation2], %s222
        // Predicated region
        $region29: #{tpu_custom_call.1} parent=27 // pred_check
          %p224 = pneg %p57
        $region30: #{tpu_custom_call.1} parent=27 // pred_check_branch
          %226 = sbr.rel (%p224) target = $region32
        $region31: #{tpu_custom_call.1} parent=27 // pred_region
          %228 = dma.done %s220, 1024
        $region32: #{tpu_custom_call.1} parent=27 // pred_fallthru
          _
        %s229 = sand.u32 %s72, 1
        %s230 = scalar_lea.sflag [#allocation6], %s229
        %s231 = sand.u32 %s72, 1
        %s232 = smul.addr %s231, 8
        %s233 = scalar_lea.vmem [#allocation5], %s232
        // Predicated region
        $region33: #{tpu_custom_call.1} parent=27 // pred_check
          %p234 = pneg %p85
        $region34: #{tpu_custom_call.1} parent=27 // pred_check_branch
          %236 = sbr.rel (%p234) target = $region36
        $region35: #{tpu_custom_call.1} parent=27 // pred_region
          %238 = dma.done %s230, 128
        $region36: #{tpu_custom_call.1} parent=27 // pred_fallthru
          _
        %s239 = sand.u32 %s44, 1
        %s240 = scalar_lea.sflag [#allocation3], %s239
        %s241 = sand.u32 %s44, 1
        %s242 = smul.addr %s241, 64
        %s243 = scalar_lea.vmem [#allocation2], %s242
        %p244 = pneg %p57
        %p245 = pneg %p54
        %s246 = sand.u32 %s72, 1
        %s247 = scalar_lea.sflag [#allocation6], %s246
        %s248 = sand.u32 %s72, 1
        %s249 = smul.addr %s248, 8
        %s250 = scalar_lea.vmem [#allocation5], %s249
        %p251 = pneg %p85
        %p252 = pneg %p82
        %p253 = pneg %p113
        %p254 = pneg %p110
        %s255 = sand.u32 %s100, 1
        %s256 = scalar_lea.sflag [#allocation4], %s255
        %s257 = sand.u32 %s100, 1
        %s258 = smul.addr %s257, 32
        %s259 = scalar_lea.vmem [#allocation7], %s258
        %s260 = smul.u32 16, %s27
        %s261 = ssub.s32 1, %s260
        %s262 = smul.u32 4, %s261
        %s263 = smul.u32 8, %s27
        %s264 = ssub.s32 1, %s263
        %v265 = vld [vmem:[%s223] sm:$0xff]
        %v266 = vld [vmem:[%s223 + $0x8] sm:$0xff]
        %v267 = vld [vmem:[%s223 + $0x10] sm:$0xff]
        %v268 = vld [vmem:[%s223 + $0x18] sm:$0xff]
        %v269 = vld [vmem:[%s223 + $0x20] sm:$0xff]
        %v270 = vld [vmem:[%s223 + $0x28] sm:$0xff]
        %v271 = vld [vmem:[%s223 + $0x30] sm:$0xff]
        %v272 = vld [vmem:[%s223 + $0x38] sm:$0xff]
        %v273 = vld [vmem:[%s233] sm:$0x1]
        %v274 = vld [vmem:[%s233 + $0x1] sm:$0x1]
        %v275 = vld [vmem:[%s233 + $0x2] sm:$0x1]
        %v276 = vld [vmem:[%s233 + $0x3] sm:$0x1]
        %v277 = vld [vmem:[%s233 + $0x4] sm:$0x1]
        %v278 = vld [vmem:[%s233 + $0x5] sm:$0x1]
        %v279 = vld [vmem:[%s233 + $0x6] sm:$0x1]
        %v280 = vld [vmem:[%s233 + $0x7] sm:$0x1]
        %v281 = vunpack.c.0.s8 %v273
        %v282 = vunpack.c.0.s8 %v274
        %v283 = vunpack.c.0.s8 %v275
        %v284 = vunpack.c.0.s8 %v276
        %v285 = vunpack.c.0.s8 %v277
        %v286 = vunpack.c.0.s8 %v278
        %v287 = vunpack.c.0.s8 %v279
        %v288 = vunpack.c.0.s8 %v280
        %v289 = vlaneseq
        %v290 = vshrl.u32 %v289, 7
        %v291 = vadd.s32 %v290, 8
        %v292 = vadd.s32 %v290, 16
        %v293 = vadd.s32 %v290, 24
        %v294 = vlaneseq
        %v295 = vand.u32 %v294, 127
        %s296 = smul.u32 %s27, 32
        %v297 = vstv %s296
        %v298 = vadd.s32 %v297, %v290
        %v299 = vadd.s32 %v297, %v291
        %v300 = vadd.s32 %v297, %v292
        %v301 = vadd.s32 %v297, %v293
        %v302 = vmul.u32 %v298, 128
        %v303 = vmul.u32 %v299, 128
        %v304 = vmul.u32 %v300, 128
        %v305 = vmul.u32 %v301, 128
        %v306 = vadd.s32 %v302, %v295
        %v307 = vadd.s32 %v303, %v295
        %v308 = vadd.s32 %v304, %v295
        %v309 = vadd.s32 %v305, %v295
        %vm310 = vcmp.lt.s32.totalorder %v306, 256
        %vm311 = vcmp.lt.s32.totalorder %v307, 256
        %vm312 = vcmp.lt.s32.totalorder %v308, 256
        %vm313 = vcmp.lt.s32.totalorder %v309, 256
        %v314 = vxor.u32 %v265, 2147483648
        %v315 = vxor.u32 %v266, 2147483648
        %v316 = vxor.u32 %v267, 2147483648
        %v317 = vxor.u32 %v268, 2147483648
        %v318 = vxor.u32 %v269, 2147483648
        %v319 = vxor.u32 %v270, 2147483648
        %v320 = vxor.u32 %v271, 2147483648
        %v321 = vxor.u32 %v272, 2147483648
        %v322 = vmul.f32 %v314, 1.442695
        %v323 = vpow.pop %v322
        %v324 = vmul.f32 %v315, 1.442695
        %v325 = vpow.pop %v324
        %v326 = vmul.f32 %v316, 1.442695
        %v327 = vpow.pop %v326
        %v328 = vmul.f32 %v317, 1.442695
        %v329 = vpow.pop %v328
        %v330 = vmul.f32 %v318, 1.442695
        %v331 = vpow.pop %v330
        %v332 = vmul.f32 %v319, 1.442695
        %v333 = vpow.pop %v332
        %v334 = vmul.f32 %v320, 1.442695
        %v335 = vpow.pop %v334
        %v336 = vmul.f32 %v321, 1.442695
        %v337 = vpow.pop %v336
        %v338 = vadd.f32 %v323, 1.0
        %v339 = vadd.f32 %v325, 1.0
        %v340 = vadd.f32 %v327, 1.0
        %v341 = vadd.f32 %v329, 1.0
        %v342 = vadd.f32 %v331, 1.0
        %v343 = vadd.f32 %v333, 1.0
        %v344 = vadd.f32 %v335, 1.0
        %v345 = vadd.f32 %v337, 1.0
        %v346 = vrcp.pop %v338
        %v347 = vmul.f32 %v338, %v346
        %v348 = vsub.f32 1.0, %v347
        %v349 = vmul.f32 %v346, %v348
        %v350 = vadd.f32 %v346, %v349
        %vm351 = vweird.f32 %v338
        %vm352 = vweird.f32 %v346
        %vm353 = vmor %vm351, %vm352
        %v354 = vsel %vm353, %v346, %v350
        %v355 = vand.u32 2147483647, %v338
        %vm356 = vcmp.eq.f32.partialorder %v355, 8.507059e+37
        %v357 = vand.u32 %v338, 2147483648
        %v358 = vor.u32 1.1754944e-38, %v357
        %v359 = vsel %vm356, %v358, %v354
        %v360 = vmul.f32 1.0, %v359
        %v361 = vrcp.pop %v339
        %v362 = vmul.f32 %v339, %v361
        %v363 = vsub.f32 1.0, %v362
        %v364 = vmul.f32 %v361, %v363
        %v365 = vadd.f32 %v361, %v364
        %vm366 = vweird.f32 %v339
        %vm367 = vweird.f32 %v361
        %vm368 = vmor %vm366, %vm367
        %v369 = vsel %vm368, %v361, %v365
        %v370 = vand.u32 2147483647, %v339
        %vm371 = vcmp.eq.f32.partialorder %v370, 8.507059e+37
        %v372 = vand.u32 %v339, 2147483648
        %v373 = vor.u32 1.1754944e-38, %v372
        %v374 = vsel %vm371, %v373, %v369
        %v375 = vmul.f32 1.0, %v374
        %v376 = vrcp.pop %v340
        %v377 = vmul.f32 %v340, %v376
        %v378 = vsub.f32 1.0, %v377
        %v379 = vmul.f32 %v376, %v378
        %v380 = vadd.f32 %v376, %v379
        %vm381 = vweird.f32 %v340
        %vm382 = vweird.f32 %v376
        %vm383 = vmor %vm381, %vm382
        %v384 = vsel %vm383, %v376, %v380
        %v385 = vand.u32 2147483647, %v340
        %vm386 = vcmp.eq.f32.partialorder %v385, 8.507059e+37
        %v387 = vand.u32 %v340, 2147483648
        %v388 = vor.u32 1.1754944e-38, %v387
        %v389 = vsel %vm386, %v388, %v384
        %v390 = vmul.f32 1.0, %v389
        %v391 = vrcp.pop %v341
        %v392 = vmul.f32 %v341, %v391
        %v393 = vsub.f32 1.0, %v392
        %v394 = vmul.f32 %v391, %v393
        %v395 = vadd.f32 %v391, %v394
        %vm396 = vweird.f32 %v341
        %vm397 = vweird.f32 %v391
        %vm398 = vmor %vm396, %vm397
        %v399 = vsel %vm398, %v391, %v395
        %v400 = vand.u32 2147483647, %v341
        %vm401 = vcmp.eq.f32.partialorder %v400, 8.507059e+37
        %v402 = vand.u32 %v341, 2147483648
        %v403 = vor.u32 1.1754944e-38, %v402
        %v404 = vsel %vm401, %v403, %v399
        %v405 = vmul.f32 1.0, %v404
        %v406 = vrcp.pop %v342
        %v407 = vmul.f32 %v342, %v406
        %v408 = vsub.f32 1.0, %v407
        %v409 = vmul.f32 %v406, %v408
        %v410 = vadd.f32 %v406, %v409
        %vm411 = vweird.f32 %v342
        %vm412 = vweird.f32 %v406
        %vm413 = vmor %vm411, %vm412
        %v414 = vsel %vm413, %v406, %v410
        %v415 = vand.u32 2147483647, %v342
        %vm416 = vcmp.eq.f32.partialorder %v415, 8.507059e+37
        %v417 = vand.u32 %v342, 2147483648
        %v418 = vor.u32 1.1754944e-38, %v417
        %v419 = vsel %vm416, %v418, %v414
        %v420 = vmul.f32 1.0, %v419
        %v421 = vrcp.pop %v343
        %v422 = vmul.f32 %v343, %v421
        %v423 = vsub.f32 1.0, %v422
        %v424 = vmul.f32 %v421, %v423
        %v425 = vadd.f32 %v421, %v424
        %vm426 = vweird.f32 %v343
        %vm427 = vweird.f32 %v421
        %vm428 = vmor %vm426, %vm427
        %v429 = vsel %vm428, %v421, %v425
        %v430 = vand.u32 2147483647, %v343
        %vm431 = vcmp.eq.f32.partialorder %v430, 8.507059e+37
        %v432 = vand.u32 %v343, 2147483648
        %v433 = vor.u32 1.1754944e-38, %v432
        %v434 = vsel %vm431, %v433, %v429
        %v435 = vmul.f32 1.0, %v434
        %v436 = vrcp.pop %v344
        %v437 = vmul.f32 %v344, %v436
        %v438 = vsub.f32 1.0, %v437
        %v439 = vmul.f32 %v436, %v438
        %v440 = vadd.f32 %v436, %v439
        %vm441 = vweird.f32 %v344
        %vm442 = vweird.f32 %v436
        %vm443 = vmor %vm441, %vm442
        %v444 = vsel %vm443, %v436, %v440
        %v445 = vand.u32 2147483647, %v344
        %vm446 = vcmp.eq.f32.partialorder %v445, 8.507059e+37
        %v447 = vand.u32 %v344, 2147483648
        %v448 = vor.u32 1.1754944e-38, %v447
        %v449 = vsel %vm446, %v448, %v444
        %v450 = vmul.f32 1.0, %v449
        %v451 = vrcp.pop %v345
        %v452 = vmul.f32 %v345, %v451
        %v453 = vsub.f32 1.0, %v452
        %v454 = vmul.f32 %v451, %v453
        %v455 = vadd.f32 %v451, %v454
        %vm456 = vweird.f32 %v345
        %vm457 = vweird.f32 %v451
        %vm458 = vmor %vm456, %vm457
        %v459 = vsel %vm458, %v451, %v455
        %v460 = vand.u32 2147483647, %v345
        %vm461 = vcmp.eq.f32.partialorder %v460, 8.507059e+37
        %v462 = vand.u32 %v345, 2147483648
        %v463 = vor.u32 1.1754944e-38, %v462
        %v464 = vsel %vm461, %v463, %v459
        %v465 = vmul.f32 1.0, %v464
        %v466 = vsel %vm310, 1, 0
        %v467 = vsel %vm311, 1, 0
        %v468 = vsel %vm312, 1, 0
        %v469 = vsel %vm313, 1, 0
        %vm470 = vcmp.eq.s32.totalorder %v466, 1
        %vm471 = vcmp.eq.s32.totalorder %v467, 1
        %vm472 = vcmp.eq.s32.totalorder %v468, 1
        %vm473 = vcmp.eq.s32.totalorder %v469, 1
        %v474 = vsel %vm470, %v360, 0.0
        %v475 = vsel %vm471, %v375, 0.0
        %v476 = vsel %vm472, %v390, 0.0
        %v477 = vsel %vm473, %v405, 0.0
        %v478 = vsel %vm470, %v420, 0.0
        %v479 = vsel %vm471, %v435, 0.0
        %v480 = vsel %vm472, %v450, 0.0
        %v481 = vsel %vm473, %v465, 0.0
        %vm482 = vcmp.eq.s32.totalorder %v281, 0
        %vm483 = vcmp.eq.s32.totalorder %v282, 0
        %vm484 = vcmp.eq.s32.totalorder %v283, 0
        %vm485 = vcmp.eq.s32.totalorder %v284, 0
        %vm486 = vcmp.eq.s32.totalorder %v285, 0
        %vm487 = vcmp.eq.s32.totalorder %v286, 0
        %vm488 = vcmp.eq.s32.totalorder %v287, 0
        %vm489 = vcmp.eq.s32.totalorder %v288, 0
        %vm490 = vcmp.eq.s32.totalorder %v281, 1
        %vm491 = vcmp.eq.s32.totalorder %v282, 1
        %vm492 = vcmp.eq.s32.totalorder %v283, 1
        %vm493 = vcmp.eq.s32.totalorder %v284, 1
        %vm494 = vcmp.eq.s32.totalorder %v285, 1
        %vm495 = vcmp.eq.s32.totalorder %v286, 1
        %vm496 = vcmp.eq.s32.totalorder %v287, 1
        %vm497 = vcmp.eq.s32.totalorder %v288, 1
        %v498 = vsel %vm470, 1, 0
        %v499 = vsel %vm471, 1, 0
        %v500 = vsel %vm472, 1, 0
        %v501 = vsel %vm473, 1, 0
        %v502 = vrot.slane %v498, 4
        %v503 = vrot.slane %v499, 4
        %v504 = vrot.slane %v500, 4
        %v505 = vrot.slane %v501, 4
        %vm506 = vcmp.ne.s32.totalorder %v502, 0
        %vm507 = vcmp.ne.s32.totalorder %v503, 0
        %vm508 = vcmp.ne.s32.totalorder %v504, 0
        %vm509 = vcmp.ne.s32.totalorder %v505, 0
        %vm510 = vmand %vm482, %vm470
        %vm511 = vmand %vm483, %vm506
        %vm512 = vmand %vm484, %vm471
        %vm513 = vmand %vm485, %vm507
        %vm514 = vmand %vm486, %vm472
        %vm515 = vmand %vm487, %vm508
        %vm516 = vmand %vm488, %vm473
        %vm517 = vmand %vm489, %vm509
        %vm518 = vmand %vm490, %vm470
        %vm519 = vmand %vm491, %vm506
        %vm520 = vmand %vm492, %vm471
        %vm521 = vmand %vm493, %vm507
        %vm522 = vmand %vm494, %vm472
        %vm523 = vmand %vm495, %vm508
        %vm524 = vmand %vm496, %vm473
        %vm525 = vmand %vm497, %vm509
        %v526 = vsel %vm510, 1.0, 0.0
        %v527 = vsel %vm511, 1.0, 0.0
        %v528 = vsel %vm512, 1.0, 0.0
        %v529 = vsel %vm513, 1.0, 0.0
        %v530 = vsel %vm514, 1.0, 0.0
        %v531 = vsel %vm515, 1.0, 0.0
        %v532 = vsel %vm516, 1.0, 0.0
        %v533 = vsel %vm517, 1.0, 0.0
        %v534 = vsel %vm518, 1.0, 0.0
        %v535 = vsel %vm519, 1.0, 0.0
        %v536 = vsel %vm520, 1.0, 0.0
        %v537 = vsel %vm521, 1.0, 0.0
        %v538 = vsel %vm522, 1.0, 0.0
        %v539 = vsel %vm523, 1.0, 0.0
        %v540 = vsel %vm524, 1.0, 0.0
        %v541 = vsel %vm525, 1.0, 0.0
        %558 = vst [vmem:[#allocation1] ss:$2 sm:$0xff] %v526
        %s559 = scalar_lea.vmem [#allocation1], 1
        %560 = vst [vmem:[%s559] ss:$2 sm:$0xff] %v527
        %s561 = scalar_lea.vmem [#allocation1], 16
        %562 = vst [vmem:[%s561] ss:$2 sm:$0xff] %v528
        %s563 = scalar_lea.vmem [#allocation1], 17
        %564 = vst [vmem:[%s563] ss:$2 sm:$0xff] %v529
        %s565 = scalar_lea.vmem [#allocation1], 32
        %566 = vst [vmem:[%s565] ss:$2 sm:$0xff] %v530
        %s567 = scalar_lea.vmem [#allocation1], 33
        %568 = vst [vmem:[%s567] ss:$2 sm:$0xff] %v531
        %s569 = scalar_lea.vmem [#allocation1], 48
        %570 = vst [vmem:[%s569] ss:$2 sm:$0xff] %v532
        %s571 = scalar_lea.vmem [#allocation1], 49
        %572 = vst [vmem:[%s571] ss:$2 sm:$0xff] %v533
        %v573 = vld.sshfl [vmem:[#allocation1] sm:$0xff pattern:$0x75316420]
        %v574 = vld.sshfl [vmem:[#allocation1 + $0x10] sm:$0xff pattern:$0x75316420]
        %v575 = vld.sshfl [vmem:[#allocation1 + $0x20] sm:$0xff pattern:$0x75316420]
        %v576 = vld.sshfl [vmem:[#allocation1 + $0x30] sm:$0xff pattern:$0x75316420]
        %577 = vst [vmem:[#allocation1] ss:$2 sm:$0xff] %v534
        %578 = vst [vmem:[%s559] ss:$2 sm:$0xff] %v535
        %579 = vst [vmem:[%s561] ss:$2 sm:$0xff] %v536
        %580 = vst [vmem:[%s563] ss:$2 sm:$0xff] %v537
        %581 = vst [vmem:[%s565] ss:$2 sm:$0xff] %v538
        %582 = vst [vmem:[%s567] ss:$2 sm:$0xff] %v539
        %583 = vst [vmem:[%s569] ss:$2 sm:$0xff] %v540
        %584 = vst [vmem:[%s571] ss:$2 sm:$0xff] %v541
        %v585 = vld.sshfl [vmem:[#allocation1] sm:$0xff pattern:$0x75316420]
        %v586 = vld.sshfl [vmem:[#allocation1 + $0x10] sm:$0xff pattern:$0x75316420]
        %v587 = vld.sshfl [vmem:[#allocation1 + $0x20] sm:$0xff pattern:$0x75316420]
        %v588 = vld.sshfl [vmem:[#allocation1 + $0x30] sm:$0xff pattern:$0x75316420]
        %v597 = vmul.f32 %v474, %v573
        %v598 = vmul.f32 %v475, %v574
        %v599 = vmul.f32 %v476, %v575
        %v600 = vmul.f32 %v477, %v576
        %v601 = vmul.f32 %v478, %v585
        %v602 = vmul.f32 %v479, %v586
        %v603 = vmul.f32 %v480, %v587
        %v604 = vmul.f32 %v481, %v588
        %v605 = vadd.f32 %v597, %v598
        %v606 = vadd.f32 %v601, %v602
        %v607 = vadd.f32 %v605, %v599
        %v608 = vadd.f32 %v606, %v603
        %v609 = vadd.f32 %v607, %v600
        %v610 = vadd.f32 %v608, %v604
        %v611 = vadd.f32 %v474, %v475
        %v612 = vadd.f32 %v478, %v479
        %v613 = vadd.f32 %v611, %v476
        %v614 = vadd.f32 %v612, %v480
        %v615 = vadd.f32 %v613, %v477
        %v616 = vadd.f32 %v614, %v481
        %v617 = vadd.f32 %v526, %v528
        %v618 = vadd.f32 %v527, %v529
        %v619 = vadd.f32 %v534, %v536
        %v620 = vadd.f32 %v535, %v537
        %v621 = vadd.f32 %v617, %v530
        %v622 = vadd.f32 %v618, %v531
        %v623 = vadd.f32 %v619, %v538
        %v624 = vadd.f32 %v620, %v539
        %v625 = vadd.f32 %v621, %v532
        %v626 = vadd.f32 %v622, %v533
        %v627 = vadd.f32 %v623, %v540
        %v628 = vadd.f32 %v624, %v541
        %633 = vst [vmem:[#allocation1] ss:$2 sm:$0xff] %v625
        %s634 = scalar_lea.vmem [#allocation1], 1
        %635 = vst [vmem:[%s634] ss:$2 sm:$0xff] %v626
        %v636 = vld.sshfl [vmem:[#allocation1] sm:$0xff pattern:$0x75316420]
        %s637 = scalar_lea.vmem [#allocation1], 16
        %638 = vst [vmem:[%s637] ss:$2 sm:$0xff] %v627
        %s639 = scalar_lea.vmem [#allocation1], 17
        %640 = vst [vmem:[%s639] ss:$2 sm:$0xff] %v628
        %v641 = vld.sshfl [vmem:[#allocation1 + $0x10] sm:$0xff pattern:$0x75316420]
        %v644 = vadd.f32 %v615, %v636
        %v645 = vadd.f32 %v616, %v641
        %646 = vst [vmem:[%s259] sm:$0xff] %v609
        %647 = vst [vmem:[%s259 + $0x10] sm:$0xff] %v644
        %648 = vst [vmem:[%s259 + $0x8] sm:$0xff] %v610
        %649 = vst [vmem:[%s259 + $0x18] sm:$0xff] %v645
        %s650 = sand.u32 %s100, 1
        %s651 = scalar_lea.sflag [#allocation4], %s650
        %s652 = sand.u32 %s100, 1
        %s653 = smul.addr %s652, 32
        %s654 = scalar_lea.vmem [#allocation7], %s653
        // Predicated region
        $region37: #{tpu_custom_call.1} parent=27 // pred_check
          %p655 = pneg %p110
        $region38: #{tpu_custom_call.1} parent=27 // pred_check_branch
          %657 = sbr.rel (%p655) target = $region40
        $region39: #{tpu_custom_call.1} parent=27 // pred_region
          %659 = vsyncadd %s651, 0
          %s660 = smul.addr %s27, 4
          %s661 = smul.addr %s26, 4
          %s662 = sadd.s32 %s660, %s661
          %s663 = smul.addr %s662, 8
          %s664 = scalar_lea.hbm %s2, %s663
          %s665 = sshll.u32 %s654, 4
          %s666 = int_to_ptr.vmem [resolvable:$true] %s665
          %s667 = sshll.u32 %s664, 4
          %s668 = int_to_ptr.hbm [resolvable:$true] %s667
          %673 = dma.vmem_to_hbm [thread:$0]  %s666, 512, %s668, %s651, 128, 128, 8
        $region40: #{tpu_custom_call.1} parent=27 // pred_fallthru
          _
      $region28: #{tpu_custom_call.1} parent=5 // pred_fallthru
        _
      %p674 = scmp.le.s32.totalorder 2, %s17
      // Predicated region
      $region41: #{tpu_custom_call.1} parent=5 // pred_check
        %p675 = pneg %p674
      $region42: #{tpu_custom_call.1} parent=5 // pred_check_branch
        %677 = sbr.rel (%p675) target = $region44
      $region43: #{tpu_custom_call.1} parent=5 // pred_region
        %s678 = ssub.s32 %s17, 2
        // Predicated region
        $region45: #{tpu_custom_call.1} parent=43 // pred_check
          %p679 = pneg %p116
        $region46: #{tpu_custom_call.1} parent=43 // pred_check_branch
          %681 = sbr.rel (%p679) target = $region48
        $region47: #{tpu_custom_call.1} parent=43 // pred_region
          %s682 = sand.u32 %s101, 1
          %s683 = scalar_lea.sflag [#allocation4], %s682
          %s684 = sand.u32 %s101, 1
          %s685 = smul.addr %s684, 32
          %s686 = scalar_lea.vmem [#allocation7], %s685
          %688 = dma.done %s683, 512
        $region48: #{tpu_custom_call.1} parent=43 // pred_fallthru
          _
      $region44: #{tpu_custom_call.1} parent=5 // pred_fallthru
        _
    $region6: #{tpu_custom_call.1} parent=1 // loop_footer
      %s21 = sadd.s32 1, %s17
    $region7: #{tpu_custom_call.1} parent=1 // loop_footer_branch
      %16 = sbr.rel target = $region3
    $region8: #{tpu_custom_call.1} parent=1 // loop_exit
      _
    %689 = vsyncpa [#allocation3], 1
    %s690 = scalar_lea.sflag [#allocation3], 1
    %691 = vsyncpa %s690, 1
    %692 = vsyncpa [#allocation6], 1
    %s693 = scalar_lea.sflag [#allocation6], 1
    %694 = vsyncpa %s693, 1
    %695 = vsyncpa [#allocation4], 1
    %s696 = scalar_lea.sflag [#allocation4], 1
    %697 = vsyncpa %s696, 1

</llo_original>
